<compile_context>
chip_gen: v7x
topology: tpu7x:2x2x1
jax: 0.10.0
libtpu: 0.0.40
codegen_flags: <defaults>
</compile_context>

<pallas_src>
import numpy as np

import jax
import jax.numpy as jnp
from jax import lax
from jax.experimental import pallas as pl
from jax.experimental.pallas import tpu as pltpu


def _round_up(x, m):
    return (x + m - 1) // m * m


# ----------------------------- kernels -----------------------------

def _embedding_vmem_table_kernel(ids_ref, table_ref, pos_ref, out_ref):
    """Small/medium-vocab path: table staged in VMEM, gather by dynamic row slices.

    ids_ref  : (N_pad,) int32 in SMEM (scalar prefetch)
    table_ref: (V, D) f32 in VMEM (constant block index -> fetched once, reused)
    pos_ref  : (T, D) f32 per-token positional rows for this tile
    out_ref  : (T, D) f32 output tile
    """
    T = out_ref.shape[0]
    base = pl.program_id(0) * T

    def gather_row(t, carry):
        row = ids_ref[base + t]
        out_ref[pl.ds(t, 1), :] = table_ref[pl.ds(row, 1), :]
        return carry

    lax.fori_loop(0, T, gather_row, 0, unroll=True if T <= 32 else 8)

    # One vectorized, lane-dense add + store over the whole (T, D) tile.
    out_ref[...] = out_ref[...] + pos_ref[...]


def _embedding_hbm_gather_kernel(ids_ref, table_hbm, pos_ref, out_ref, buf, sems):
    """Large-vocab fallback: manual HBM row gather, double-buffered across grid steps.

    ids_ref  : (N_pad,) int32 in SMEM (scalar prefetch)
    table_hbm: (V, D) f32 left in HBM (rows gathered by DMA)
    pos_ref  : (T, D) f32 positional rows for this tile
    out_ref  : (T, D) f32 output tile
    buf      : (2, T, D) f32 VMEM scratch (double buffer)
    sems     : (2,) DMA semaphores (one per slot; all row copies of a slot share it)
    """
    T = out_ref.shape[0]
    i = pl.program_id(0)
    n_tiles = pl.num_programs(0)

    def issue_tile(tile_idx, slot):
        base = tile_idx * T

        def issue_row(t, carry):
            row = ids_ref[base + t]
            pltpu.make_async_copy(
                table_hbm.at[pl.ds(row, 1), :],
                buf.at[slot, pl.ds(t, 1), :],
                sems.at[slot],
            ).start()
            return carry

        lax.fori_loop(0, T, issue_row, 0, unroll=True if T <= 32 else 8)

    # Prime the pipeline with tile 0 on the very first step.
    @pl.when(i == 0)
    def _():
        issue_tile(0, 0)

    # Prefetch the NEXT tile into the other slot BEFORE waiting on the current one,
    # so its gather latency hides behind this step's add + output writeback.
    @pl.when(i + 1 < n_tiles)
    def _():
        issue_tile(i + 1, (i + 1) % 2)

    slot = i % 2
    cur_base = i * T

    # Wait for every row of the current slot; descriptors match the issued copies.
    def wait_row(t, carry):
        row = ids_ref[cur_base + t]
        pltpu.make_async_copy(
            table_hbm.at[pl.ds(row, 1), :],
            buf.at[slot, pl.ds(t, 1), :],
            sems.at[slot],
        ).wait()
        return carry

    lax.fori_loop(0, T, wait_row, 0, unroll=True if T <= 32 else 8)

    out_ref[...] = buf[slot] + pos_ref[...]


# ----------------------------- wrapper -----------------------------

def embedding_forward(input_ids, table, pos_enc, *, tile_tokens=None,
                      force_hbm_gather=False):
    """input_ids: (B, L) int; table: (V, D) f32; pos_enc: (max_seq_len, D) f32."""
    B, L = input_ids.shape
    V, D = table.shape
    N = B * L

    # Clamp so an out-of-range id cannot cause an OOB gather/DMA (nn.Embedding raises;
    # in-range inputs are unaffected).
    ids = jnp.clip(input_ids.reshape(N).astype(jnp.int32), 0, V - 1)

    # Per-token positional rows, flattened to match the flattened token axis
    # (wrapper-side layout plumbing; mirrors `positional_encoding[:length]` broadcast).
    pos_rows = pos_enc[:L].astype(jnp.float32)
    pos_flat = jnp.broadcast_to(pos_rows[None], (B, L, D)).reshape(N, D)

    # Token tiling: large lane-dense tiles amortise per-step overhead.
    if tile_tokens is None:
        tile_tokens = 512
    T = min(_round_up(tile_tokens, 8), _round_up(N, 8))
    N_pad = _round_up(N, T)
    if N_pad != N:
        ids = jnp.pad(ids, (0, N_pad - N))                    # padded tokens -> row 0 (zeroed)
        pos_flat = jnp.pad(pos_flat, ((0, N_pad - N), (0, 0)))
    num_tiles = N_pad // T

    table = table.astype(jnp.float32)
    table_bytes = V * D * 4
    tile_bytes = T * D * 4

    # VMEM-staged-table threshold sized for v7x (64 MiB physical VMEM): table block is
    # double-buffered by the pipeline, plus pos/out double buffers.
    vmem_need_staged = 2 * table_bytes + 4 * tile_bytes
    use_vmem_table = (not force_hbm_gather) and vmem_need_staged <= (40 << 20)

    if use_vmem_table:
        vmem_limit = int(min(64 << 20, max(32 << 20, vmem_need_staged + (8 << 20))))
        grid_spec = pltpu.PrefetchScalarGridSpec(
            num_scalar_prefetch=1,                 # flattened ids -> SMEM
            grid=(num_tiles,),
            in_specs=[
                pl.BlockSpec((V, D), lambda i, ids: (0, 0)),   # whole table, fetched once
                pl.BlockSpec((T, D), lambda i, ids: (i, 0)),   # pos rows for this tile
            ],
            out_specs=pl.BlockSpec((T, D), lambda i, ids: (i, 0)),
        )
        out_flat = pl.pallas_call(
            _embedding_vmem_table_kernel,
            out_shape=jax.ShapeDtypeStruct((N_pad, D), jnp.float32),
            grid_spec=grid_spec,
            compiler_params=pltpu.CompilerParams(
                dimension_semantics=("parallel",),   # independent tiles -> megacore on v7x
                vmem_limit_bytes=vmem_limit,
            ),
        )(ids, table, pos_flat)
    else:
        vmem_need = 6 * tile_bytes   # (2,T,D) scratch + pos/out double buffers
        vmem_limit = int(min(64 << 20, max(32 << 20, vmem_need + (8 << 20))))
        grid_spec = pltpu.PrefetchScalarGridSpec(
            num_scalar_prefetch=1,
            grid=(num_tiles,),
            in_specs=[
                pl.BlockSpec(memory_space=pl.ANY),             # table stays in HBM
                pl.BlockSpec((T, D), lambda i, ids: (i, 0)),
            ],
            out_specs=pl.BlockSpec((T, D), lambda i, ids: (i, 0)),
            scratch_shapes=[
                pltpu.VMEM((2, T, D), jnp.float32),
                pltpu.SemaphoreType.DMA((2,)),
            ],
        )
        out_flat = pl.pallas_call(
            _embedding_hbm_gather_kernel,
            out_shape=jax.ShapeDtypeStruct((N_pad, D), jnp.float32),
            grid_spec=grid_spec,
            compiler_params=pltpu.CompilerParams(
                # Cross-step slot priming requires one core walking the whole grid,
                # so keep this axis "arbitrary" (no measurable cost on v5e/v6e).
                dimension_semantics=("arbitrary",),
                vmem_limit_bytes=vmem_limit,
            ),
        )(ids, table, pos_flat)

    return out_flat[:N].reshape(B, L, D)


# ------------------------- parameter construction -------------------------

def get_positional_enc(max_seq_len, embedding_dim):
    # Faithful port of PositionalEncoding.get_positional_enc (numpy, then f32 cast).
    position_code = np.array(
        [[pos / np.power(10000, 2 * i / embedding_dim) for i in range(embedding_dim)]
         if pos != 0 else np.zeros(embedding_dim)
         for pos in range(max_seq_len)]
    )
    position_code[1:, 0::2] = np.sin(position_code[1:, 0::2])
    position_code[1:, 1::2] = np.cos(position_code[1:, 1::2])
    s = position_code.sum(axis=-1, keepdims=True)
    position_code = position_code / np.sqrt(s + 1e-05)
    return jnp.asarray(position_code, dtype=jnp.float32)


def init_embedding_table(key, vocab_size, embedding_dim):
    # nn.Embedding default init: N(0, 1); padding_idx=0 -> row 0 zeroed.
    table = jax.random.normal(key, (vocab_size, embedding_dim), dtype=jnp.float32)
    table = table.at[0].set(0.0)
    return table


# ---------------------------------- main ----------------------------------

if __name__ == "__main__":
    # Config: embedding_dim=128 (multiple of 128 -> lane-dense tiles),
    # max_seq_len=16, vocab_size=64, batch=2, seq_len=8.
    B, L = 2, 8
    D, MAX_SEQ_LEN, VOCAB = 128, 16, 64

    key = jax.random.PRNGKey(0)
    k_table, k_ids = jax.random.split(key)

    table = init_embedding_table(k_table, VOCAB, D)
    pos_enc = get_positional_enc(MAX_SEQ_LEN, D)
    input_ids = jax.random.randint(k_ids, (B, L), 0, VOCAB, dtype=jnp.int32)

    # Pure-JAX reference (same semantics as the PyTorch forward).
    ref = jnp.take(table, input_ids, axis=0) + pos_enc[:L][None, :, :]

    # Primary path: whole table staged in VMEM, single big token tile.
    out = jax.block_until_ready(embedding_forward(input_ids, table, pos_enc))
    assert out.shape == (B, L, D)
    assert jnp.allclose(out, ref, atol=1e-6, rtol=1e-6)

    # Large-vocab fallback path (manual double-buffered HBM row gather); force a small
    # tile so the demo actually exercises the cross-step prefetch (2 tiles of 8 tokens).
    out_hbm = jax.block_until_ready(
        embedding_forward(input_ids, table, pos_enc,
                          force_hbm_gather=True, tile_tokens=8))
    assert jnp.allclose(out_hbm, ref, atol=1e-6, rtol=1e-6)

    print("KERNEL_OK")
</pallas_src>

<mosaic_0001>
module attributes {stable_mosaic.version = 11 : i64} {
  func.func @_embedding_vmem_table_kernel(%arg0: i32, %arg1: memref<16xi32, #tpu.memory_space<smem>>, %arg2: memref<64x128xf32, #tpu.memory_space<vmem>>, %arg3: memref<16x128xf32, #tpu.memory_space<vmem>>, %arg4: memref<16x128xf32, #tpu.memory_space<vmem>>) attributes {dimension_semantics = [#tpu.dimension_semantics<parallel>], iteration_bounds = array<i64: 1>, scalar_prefetch = 1 : i64, scratch_operands = 0 : i64, tpu.core_type = #tpu.core_type<tc>, window_params = [{pipeline_mode = #tpu.pipeline_mode<synchronous>, transform_indices = @transform_0, window_bounds = array<i64: 64, 128>}, {transform_indices = @transform_1, window_bounds = array<i64: 16, 128>}, {transform_indices = @transform_2, window_bounds = array<i64: 16, 128>}]} {
    %c16_i32 = arith.constant 16 : i32
    %0 = arith.muli %arg0, %c16_i32 : i32
    %c0_i32 = arith.constant 0 : i32
    %1 = arith.addi %0, %c0_i32 : i32
    %2 = arith.index_cast %1 : i32 to index
    %3 = memref.load %arg1[%2] : memref<16xi32, #tpu.memory_space<smem>>
    %4 = arith.index_cast %3 : i32 to index
    %c0 = arith.constant 0 : index
    %5 = vector.load %arg2[%4, %c0] : memref<64x128xf32, #tpu.memory_space<vmem>>, vector<1x128xf32>
    %6 = arith.index_cast %c0_i32 : i32 to index
    %c0_0 = arith.constant 0 : index
    %7 = vector.load %arg4[%6, %c0_0] : memref<16x128xf32, #tpu.memory_space<vmem>>, vector<1x128xf32>
    tpu.vector_store %arg4[%6, %c0_0], %5 {strides = array<i32>} : memref<16x128xf32, #tpu.memory_space<vmem>>, vector<1x128xf32>,
    %c1_i32 = arith.constant 1 : i32
    %8 = arith.addi %0, %c1_i32 : i32
    %9 = arith.index_cast %8 : i32 to index
    %10 = memref.load %arg1[%9] : memref<16xi32, #tpu.memory_space<smem>>
    %11 = arith.index_cast %10 : i32 to index
    %c0_1 = arith.constant 0 : index
    %12 = vector.load %arg2[%11, %c0_1] : memref<64x128xf32, #tpu.memory_space<vmem>>, vector<1x128xf32>
    %13 = arith.index_cast %c1_i32 : i32 to index
    %c0_2 = arith.constant 0 : index
    %14 = vector.load %arg4[%13, %c0_2] : memref<16x128xf32, #tpu.memory_space<vmem>>, vector<1x128xf32>
    tpu.vector_store %arg4[%13, %c0_2], %12 {strides = array<i32>} : memref<16x128xf32, #tpu.memory_space<vmem>>, vector<1x128xf32>,
    %c2_i32 = arith.constant 2 : i32
    %15 = arith.addi %0, %c2_i32 : i32
    %16 = arith.index_cast %15 : i32 to index
    %17 = memref.load %arg1[%16] : memref<16xi32, #tpu.memory_space<smem>>
    %18 = arith.index_cast %17 : i32 to index
    %c0_3 = arith.constant 0 : index
    %19 = vector.load %arg2[%18, %c0_3] : memref<64x128xf32, #tpu.memory_space<vmem>>, vector<1x128xf32>
    %20 = arith.index_cast %c2_i32 : i32 to index
    %c0_4 = arith.constant 0 : index
    %21 = vector.load %arg4[%20, %c0_4] : memref<16x128xf32, #tpu.memory_space<vmem>>, vector<1x128xf32>
    tpu.vector_store %arg4[%20, %c0_4], %19 {strides = array<i32>} : memref<16x128xf32, #tpu.memory_space<vmem>>, vector<1x128xf32>,
    %c3_i32 = arith.constant 3 : i32
    %22 = arith.addi %0, %c3_i32 : i32
    %23 = arith.index_cast %22 : i32 to index
    %24 = memref.load %arg1[%23] : memref<16xi32, #tpu.memory_space<smem>>
    %25 = arith.index_cast %24 : i32 to index
    %c0_5 = arith.constant 0 : index
    %26 = vector.load %arg2[%25, %c0_5] : memref<64x128xf32, #tpu.memory_space<vmem>>, vector<1x128xf32>
    %27 = arith.index_cast %c3_i32 : i32 to index
    %c0_6 = arith.constant 0 : index
    %28 = vector.load %arg4[%27, %c0_6] : memref<16x128xf32, #tpu.memory_space<vmem>>, vector<1x128xf32>
    tpu.vector_store %arg4[%27, %c0_6], %26 {strides = array<i32>} : memref<16x128xf32, #tpu.memory_space<vmem>>, vector<1x128xf32>,
    %c4_i32 = arith.constant 4 : i32
    %29 = arith.addi %0, %c4_i32 : i32
    %30 = arith.index_cast %29 : i32 to index
    %31 = memref.load %arg1[%30] : memref<16xi32, #tpu.memory_space<smem>>
    %32 = arith.index_cast %31 : i32 to index
    %c0_7 = arith.constant 0 : index
    %33 = vector.load %arg2[%32, %c0_7] : memref<64x128xf32, #tpu.memory_space<vmem>>, vector<1x128xf32>
    %34 = arith.index_cast %c4_i32 : i32 to index
    %c0_8 = arith.constant 0 : index
    %35 = vector.load %arg4[%34, %c0_8] : memref<16x128xf32, #tpu.memory_space<vmem>>, vector<1x128xf32>
    tpu.vector_store %arg4[%34, %c0_8], %33 {strides = array<i32>} : memref<16x128xf32, #tpu.memory_space<vmem>>, vector<1x128xf32>,
    %c5_i32 = arith.constant 5 : i32
    %36 = arith.addi %0, %c5_i32 : i32
    %37 = arith.index_cast %36 : i32 to index
    %38 = memref.load %arg1[%37] : memref<16xi32, #tpu.memory_space<smem>>
    %39 = arith.index_cast %38 : i32 to index
    %c0_9 = arith.constant 0 : index
    %40 = vector.load %arg2[%39, %c0_9] : memref<64x128xf32, #tpu.memory_space<vmem>>, vector<1x128xf32>
    %41 = arith.index_cast %c5_i32 : i32 to index
    %c0_10 = arith.constant 0 : index
    %42 = vector.load %arg4[%41, %c0_10] : memref<16x128xf32, #tpu.memory_space<vmem>>, vector<1x128xf32>
    tpu.vector_store %arg4[%41, %c0_10], %40 {strides = array<i32>} : memref<16x128xf32, #tpu.memory_space<vmem>>, vector<1x128xf32>,
    %c6_i32 = arith.constant 6 : i32
    %43 = arith.addi %0, %c6_i32 : i32
    %44 = arith.index_cast %43 : i32 to index
    %45 = memref.load %arg1[%44] : memref<16xi32, #tpu.memory_space<smem>>
    %46 = arith.index_cast %45 : i32 to index
    %c0_11 = arith.constant 0 : index
    %47 = vector.load %arg2[%46, %c0_11] : memref<64x128xf32, #tpu.memory_space<vmem>>, vector<1x128xf32>
    %48 = arith.index_cast %c6_i32 : i32 to index
    %c0_12 = arith.constant 0 : index
    %49 = vector.load %arg4[%48, %c0_12] : memref<16x128xf32, #tpu.memory_space<vmem>>, vector<1x128xf32>
    tpu.vector_store %arg4[%48, %c0_12], %47 {strides = array<i32>} : memref<16x128xf32, #tpu.memory_space<vmem>>, vector<1x128xf32>,
    %c7_i32 = arith.constant 7 : i32
    %50 = arith.addi %0, %c7_i32 : i32
    %51 = arith.index_cast %50 : i32 to index
    %52 = memref.load %arg1[%51] : memref<16xi32, #tpu.memory_space<smem>>
    %53 = arith.index_cast %52 : i32 to index
    %c0_13 = arith.constant 0 : index
    %54 = vector.load %arg2[%53, %c0_13] : memref<64x128xf32, #tpu.memory_space<vmem>>, vector<1x128xf32>
    %55 = arith.index_cast %c7_i32 : i32 to index
    %c0_14 = arith.constant 0 : index
    %56 = vector.load %arg4[%55, %c0_14] : memref<16x128xf32, #tpu.memory_space<vmem>>, vector<1x128xf32>
    tpu.vector_store %arg4[%55, %c0_14], %54 {strides = array<i32>} : memref<16x128xf32, #tpu.memory_space<vmem>>, vector<1x128xf32>,
    %c8_i32 = arith.constant 8 : i32
    %57 = arith.addi %0, %c8_i32 : i32
    %58 = arith.index_cast %57 : i32 to index
    %59 = memref.load %arg1[%58] : memref<16xi32, #tpu.memory_space<smem>>
    %60 = arith.index_cast %59 : i32 to index
    %c0_15 = arith.constant 0 : index
    %61 = vector.load %arg2[%60, %c0_15] : memref<64x128xf32, #tpu.memory_space<vmem>>, vector<1x128xf32>
    %62 = arith.index_cast %c8_i32 : i32 to index
    %c0_16 = arith.constant 0 : index
    %63 = vector.load %arg4[%62, %c0_16] : memref<16x128xf32, #tpu.memory_space<vmem>>, vector<1x128xf32>
    tpu.vector_store %arg4[%62, %c0_16], %61 {strides = array<i32>} : memref<16x128xf32, #tpu.memory_space<vmem>>, vector<1x128xf32>,
    %c9_i32 = arith.constant 9 : i32
    %64 = arith.addi %0, %c9_i32 : i32
    %65 = arith.index_cast %64 : i32 to index
    %66 = memref.load %arg1[%65] : memref<16xi32, #tpu.memory_space<smem>>
    %67 = arith.index_cast %66 : i32 to index
    %c0_17 = arith.constant 0 : index
    %68 = vector.load %arg2[%67, %c0_17] : memref<64x128xf32, #tpu.memory_space<vmem>>, vector<1x128xf32>
    %69 = arith.index_cast %c9_i32 : i32 to index
    %c0_18 = arith.constant 0 : index
    %70 = vector.load %arg4[%69, %c0_18] : memref<16x128xf32, #tpu.memory_space<vmem>>, vector<1x128xf32>
    tpu.vector_store %arg4[%69, %c0_18], %68 {strides = array<i32>} : memref<16x128xf32, #tpu.memory_space<vmem>>, vector<1x128xf32>,
    %c10_i32 = arith.constant 10 : i32
    %71 = arith.addi %0, %c10_i32 : i32
    %72 = arith.index_cast %71 : i32 to index
    %73 = memref.load %arg1[%72] : memref<16xi32, #tpu.memory_space<smem>>
    %74 = arith.index_cast %73 : i32 to index
    %c0_19 = arith.constant 0 : index
    %75 = vector.load %arg2[%74, %c0_19] : memref<64x128xf32, #tpu.memory_space<vmem>>, vector<1x128xf32>
    %76 = arith.index_cast %c10_i32 : i32 to index
    %c0_20 = arith.constant 0 : index
    %77 = vector.load %arg4[%76, %c0_20] : memref<16x128xf32, #tpu.memory_space<vmem>>, vector<1x128xf32>
    tpu.vector_store %arg4[%76, %c0_20], %75 {strides = array<i32>} : memref<16x128xf32, #tpu.memory_space<vmem>>, vector<1x128xf32>,
    %c11_i32 = arith.constant 11 : i32
    %78 = arith.addi %0, %c11_i32 : i32
    %79 = arith.index_cast %78 : i32 to index
    %80 = memref.load %arg1[%79] : memref<16xi32, #tpu.memory_space<smem>>
    %81 = arith.index_cast %80 : i32 to index
    %c0_21 = arith.constant 0 : index
    %82 = vector.load %arg2[%81, %c0_21] : memref<64x128xf32, #tpu.memory_space<vmem>>, vector<1x128xf32>
    %83 = arith.index_cast %c11_i32 : i32 to index
    %c0_22 = arith.constant 0 : index
    %84 = vector.load %arg4[%83, %c0_22] : memref<16x128xf32, #tpu.memory_space<vmem>>, vector<1x128xf32>
    tpu.vector_store %arg4[%83, %c0_22], %82 {strides = array<i32>} : memref<16x128xf32, #tpu.memory_space<vmem>>, vector<1x128xf32>,
    %c12_i32 = arith.constant 12 : i32
    %85 = arith.addi %0, %c12_i32 : i32
    %86 = arith.index_cast %85 : i32 to index
    %87 = memref.load %arg1[%86] : memref<16xi32, #tpu.memory_space<smem>>
    %88 = arith.index_cast %87 : i32 to index
    %c0_23 = arith.constant 0 : index
    %89 = vector.load %arg2[%88, %c0_23] : memref<64x128xf32, #tpu.memory_space<vmem>>, vector<1x128xf32>
    %90 = arith.index_cast %c12_i32 : i32 to index
    %c0_24 = arith.constant 0 : index
    %91 = vector.load %arg4[%90, %c0_24] : memref<16x128xf32, #tpu.memory_space<vmem>>, vector<1x128xf32>
    tpu.vector_store %arg4[%90, %c0_24], %89 {strides = array<i32>} : memref<16x128xf32, #tpu.memory_space<vmem>>, vector<1x128xf32>,
    %c13_i32 = arith.constant 13 : i32
    %92 = arith.addi %0, %c13_i32 : i32
    %93 = arith.index_cast %92 : i32 to index
    %94 = memref.load %arg1[%93] : memref<16xi32, #tpu.memory_space<smem>>
    %95 = arith.index_cast %94 : i32 to index
    %c0_25 = arith.constant 0 : index
    %96 = vector.load %arg2[%95, %c0_25] : memref<64x128xf32, #tpu.memory_space<vmem>>, vector<1x128xf32>
    %97 = arith.index_cast %c13_i32 : i32 to index
    %c0_26 = arith.constant 0 : index
    %98 = vector.load %arg4[%97, %c0_26] : memref<16x128xf32, #tpu.memory_space<vmem>>, vector<1x128xf32>
    tpu.vector_store %arg4[%97, %c0_26], %96 {strides = array<i32>} : memref<16x128xf32, #tpu.memory_space<vmem>>, vector<1x128xf32>,
    %c14_i32 = arith.constant 14 : i32
    %99 = arith.addi %0, %c14_i32 : i32
    %100 = arith.index_cast %99 : i32 to index
    %101 = memref.load %arg1[%100] : memref<16xi32, #tpu.memory_space<smem>>
    %102 = arith.index_cast %101 : i32 to index
    %c0_27 = arith.constant 0 : index
    %103 = vector.load %arg2[%102, %c0_27] : memref<64x128xf32, #tpu.memory_space<vmem>>, vector<1x128xf32>
    %104 = arith.index_cast %c14_i32 : i32 to index
    %c0_28 = arith.constant 0 : index
    %105 = vector.load %arg4[%104, %c0_28] : memref<16x128xf32, #tpu.memory_space<vmem>>, vector<1x128xf32>
    tpu.vector_store %arg4[%104, %c0_28], %103 {strides = array<i32>} : memref<16x128xf32, #tpu.memory_space<vmem>>, vector<1x128xf32>,
    %c15_i32 = arith.constant 15 : i32
    %106 = arith.addi %0, %c15_i32 : i32
    %107 = arith.index_cast %106 : i32 to index
    %108 = memref.load %arg1[%107] : memref<16xi32, #tpu.memory_space<smem>>
    %109 = arith.index_cast %108 : i32 to index
    %c0_29 = arith.constant 0 : index
    %110 = vector.load %arg2[%109, %c0_29] : memref<64x128xf32, #tpu.memory_space<vmem>>, vector<1x128xf32>
    %111 = arith.index_cast %c15_i32 : i32 to index
    %c0_30 = arith.constant 0 : index
    %112 = vector.load %arg4[%111, %c0_30] : memref<16x128xf32, #tpu.memory_space<vmem>>, vector<1x128xf32>
    tpu.vector_store %arg4[%111, %c0_30], %110 {strides = array<i32>} : memref<16x128xf32, #tpu.memory_space<vmem>>, vector<1x128xf32>,
    %c16_i32_31 = arith.constant 16 : i32
    %c0_32 = arith.constant 0 : index
    %c0_33 = arith.constant 0 : index
    %113 = vector.load %arg4[%c0_32, %c0_33] : memref<16x128xf32, #tpu.memory_space<vmem>>, vector<16x128xf32>
    %c0_34 = arith.constant 0 : index
    %c0_35 = arith.constant 0 : index
    %114 = vector.load %arg3[%c0_34, %c0_35] : memref<16x128xf32, #tpu.memory_space<vmem>>, vector<16x128xf32>
    %115 = arith.addf %113, %114 : vector<16x128xf32>
    %c0_36 = arith.constant 0 : index
    %c0_37 = arith.constant 0 : index
    %116 = vector.load %arg4[%c0_36, %c0_37] : memref<16x128xf32, #tpu.memory_space<vmem>>, vector<16x128xf32>
    tpu.vector_store %arg4[%c0_36, %c0_37], %115 {strides = array<i32>} : memref<16x128xf32, #tpu.memory_space<vmem>>, vector<16x128xf32>,
    return
  }
  func.func @transform_0(%arg0: i32, %arg1: memref<16xi32, #tpu.memory_space<smem>>) -> (i32, i32) {
    %c0_i32 = arith.constant 0 : i32
    %c0_i32_0 = arith.constant 0 : i32
    %c0_i32_1 = arith.constant 0 : i32
    return %c0_i32, %c0_i32_0 : i32, i32
  }
  func.func @transform_1(%arg0: i32, %arg1: memref<16xi32, #tpu.memory_space<smem>>) -> (i32, i32) {
    %c0_i32 = arith.constant 0 : i32
    %c0_i32_0 = arith.constant 0 : i32
    return %arg0, %c0_i32 : i32, i32
  }
  func.func @transform_2(%arg0: i32, %arg1: memref<16xi32, #tpu.memory_space<smem>>) -> (i32, i32) {
    %c0_i32 = arith.constant 0 : i32
    %c0_i32_0 = arith.constant 0 : i32
    return %arg0, %c0_i32 : i32, i32
  }
}

</mosaic_0001>

<llo_original>
// kernel: tpu_custom_call.1
$region0: #{tpu_custom_call.1}
  #allocation0 [shape = 'u32[]', space=smem, size = 0x4, offset = 0x4, fixed_abs, tag = 'smem constant byte address 0x4 - core index']
  #allocation1 [shape = 'u32[144,128]{1,0:T(1,128)}', space=vmem, size = 0x12000, scoped, tag = 'internal scratch']
  #allocation2 [shape = 's32[1]{0}', space=sflag, size = 0x4, scoped, tag = 'scoped memory for tpu_custom_call.1']
  #allocation3 [shape = 'u8[512]{0}', space=smem, size = 0x200, scoped, tag = 'prefetched SMEM operand 0']
  %s0 = inlined_call_operand.hbm [shape: s32[16], index: 0, kind: input, shape index: {}]
  %s1 = inlined_call_operand.hbm [shape: f32[64,128], index: 1, kind: input, shape index: {}]
  %s2 = inlined_call_operand.hbm [shape: f32[16,128], index: 2, kind: input, shape index: {}]
  %s3 = inlined_call_operand.hbm [shape: f32[16,128], index: 3, kind: output, shape index: {}]
  %s4 = sld [smem:[#allocation0]]
  $region26: #{tpu_custom_call.1} parent=0
    _
  %s6 = ssub.s32 1, %s4
  %s7 = scalar_select 0, %s6, %s4
  %9 = dma.hbm_to_smem %s0, 16, [#allocation3], [#allocation2]
  %10 = dma.done [#allocation2], 16
  %11 = sfence
  $region1: #{tpu_custom_call.1} parent=0
    #allocation4 [shape = 'u8[32768]{0}', space=vmem, size = 0x8000, scoped, tag = 'input window, operand 1, single buffered']
    #allocation5 [shape = 's32[1]{0}', space=sflag, size = 0x4, scoped, tag = 'scoped memory for tpu_custom_call.1']
    #allocation6 [shape = 's32[1]{0}', space=sflag, size = 0x4, scoped, tag = 'scoped memory for tpu_custom_call.1']
    #allocation7 [shape = 'u8[8192]{0}', space=vmem, size = 0x2000, scoped, tag = 'input window, operand 2, single buffered']
    #allocation8 [shape = 's32[1]{0}', space=sflag, size = 0x4, scoped, tag = 'scoped memory for tpu_custom_call.1']
    #allocation9 [shape = 'u8[8192]{0}', space=vmem, size = 0x2000, scoped, tag = 'output window, operand 0, single buffered']
    %12 = vsyncpa [#allocation5], 0
    %13 = vsyncpa [#allocation8], 0
    %14 = vsyncpa [#allocation6], 0
    // Predicated region
    $region2: #{tpu_custom_call.1} parent=1 // pred_check
      _
    $region3: #{tpu_custom_call.1} parent=1 // pred_check_branch
      %16 = sbr.rel (0) target = $region5
    $region4: #{tpu_custom_call.1} parent=1 // pred_region
      %s18 = ssub.s32 1024, 1024
      %19 = vsyncadd [#allocation5], %s18
      %s20 = sshll.u32 [#allocation4], 4
      %s21 = int_to_ptr.vmem [resolvable:$true] %s20
      %26 = dma.hbm_to_vmem [thread:$0]  %s1, 1024, %s21, [#allocation5], 128, 128, 8
    $region5: #{tpu_custom_call.1} parent=1 // pred_fallthru
      _
    // Predicated region
    $region6: #{tpu_custom_call.1} parent=1 // pred_check
      _
    $region7: #{tpu_custom_call.1} parent=1 // pred_check_branch
      %28 = sbr.rel (0) target = $region9
    $region8: #{tpu_custom_call.1} parent=1 // pred_region
      %s30 = ssub.s32 256, 256
      %31 = vsyncadd [#allocation8], %s30
      %s32 = sshll.u32 [#allocation7], 4
      %s33 = int_to_ptr.vmem [resolvable:$true] %s32
      %38 = dma.hbm_to_vmem [thread:$0]  %s2, 256, %s33, [#allocation8], 128, 128, 8
    $region9: #{tpu_custom_call.1} parent=1 // pred_fallthru
      _
    // Predicated region
    $region10: #{tpu_custom_call.1} parent=1 // pred_check
      _
    $region11: #{tpu_custom_call.1} parent=1 // pred_check_branch
      %40 = sbr.rel (0) target = $region13
    $region12: #{tpu_custom_call.1} parent=1 // pred_region
      %41 = dma.done [#allocation5], 1024
    $region13: #{tpu_custom_call.1} parent=1 // pred_fallthru
      _
    // Predicated region
    $region14: #{tpu_custom_call.1} parent=1 // pred_check
      _
    $region15: #{tpu_custom_call.1} parent=1 // pred_check_branch
      %43 = sbr.rel (0) target = $region17
    $region16: #{tpu_custom_call.1} parent=1 // pred_region
      %44 = dma.done [#allocation8], 256
    $region17: #{tpu_custom_call.1} parent=1 // pred_fallthru
      _
    %s45 = smul.u32 0, 16
    %s46 = sld [smem:[#allocation3 + %s45]]
    %s47 = scalar_lea.vmem [#allocation4], %s46
    %v48 = vld [vmem:[%s47] sm:$0x1]
    %49 = vst [vmem:[#allocation9] sm:$0x1] %v48
    %s50 = sadd.s32 %s45, 1
    %s51 = sld [smem:[#allocation3 + %s50]]
    %s52 = scalar_lea.vmem [#allocation4], %s51
    %v53 = vld [vmem:[%s52] sm:$0x1]
    %54 = vst [vmem:[#allocation9 + $0x1] sm:$0x1] %v53
    %s55 = sadd.s32 %s45, 2
    %s56 = sld [smem:[#allocation3 + %s55]]
    %s57 = scalar_lea.vmem [#allocation4], %s56
    %v58 = vld [vmem:[%s57] sm:$0x1]
    %59 = vst [vmem:[#allocation9 + $0x2] sm:$0x1] %v58
    %s60 = sadd.s32 %s45, 3
    %s61 = sld [smem:[#allocation3 + %s60]]
    %s62 = scalar_lea.vmem [#allocation4], %s61
    %v63 = vld [vmem:[%s62] sm:$0x1]
    %64 = vst [vmem:[#allocation9 + $0x3] sm:$0x1] %v63
    %s65 = sadd.s32 %s45, 4
    %s66 = sld [smem:[#allocation3 + %s65]]
    %s67 = scalar_lea.vmem [#allocation4], %s66
    %v68 = vld [vmem:[%s67] sm:$0x1]
    %69 = vst [vmem:[#allocation9 + $0x4] sm:$0x1] %v68
    %s70 = sadd.s32 %s45, 5
    %s71 = sld [smem:[#allocation3 + %s70]]
    %s72 = scalar_lea.vmem [#allocation4], %s71
    %v73 = vld [vmem:[%s72] sm:$0x1]
    %74 = vst [vmem:[#allocation9 + $0x5] sm:$0x1] %v73
    %s75 = sadd.s32 %s45, 6
    %s76 = sld [smem:[#allocation3 + %s75]]
    %s77 = scalar_lea.vmem [#allocation4], %s76
    %v78 = vld [vmem:[%s77] sm:$0x1]
    %79 = vst [vmem:[#allocation9 + $0x6] sm:$0x1] %v78
    %s80 = sadd.s32 %s45, 7
    %s81 = sld [smem:[#allocation3 + %s80]]
    %s82 = scalar_lea.vmem [#allocation4], %s81
    %v83 = vld [vmem:[%s82] sm:$0x1]
    %84 = vst [vmem:[#allocation9 + $0x7] sm:$0x1] %v83
    %s85 = sadd.s32 %s45, 8
    %s86 = sld [smem:[#allocation3 + %s85]]
    %s87 = scalar_lea.vmem [#allocation4], %s86
    %v88 = vld [vmem:[%s87] sm:$0x1]
    %89 = vst [vmem:[#allocation9 + $0x8] sm:$0x1] %v88
    %s90 = sadd.s32 %s45, 9
    %s91 = sld [smem:[#allocation3 + %s90]]
    %s92 = scalar_lea.vmem [#allocation4], %s91
    %v93 = vld [vmem:[%s92] sm:$0x1]
    %94 = vst [vmem:[#allocation9 + $0x9] sm:$0x1] %v93
    %s95 = sadd.s32 %s45, 10
    %s96 = sld [smem:[#allocation3 + %s95]]
    %s97 = scalar_lea.vmem [#allocation4], %s96
    %v98 = vld [vmem:[%s97] sm:$0x1]
    %99 = vst [vmem:[#allocation9 + $0xa] sm:$0x1] %v98
    %s100 = sadd.s32 %s45, 11
    %s101 = sld [smem:[#allocation3 + %s100]]
    %s102 = scalar_lea.vmem [#allocation4], %s101
    %v103 = vld [vmem:[%s102] sm:$0x1]
    %104 = vst [vmem:[#allocation9 + $0xb] sm:$0x1] %v103
    %s105 = sadd.s32 %s45, 12
    %s106 = sld [smem:[#allocation3 + %s105]]
    %s107 = scalar_lea.vmem [#allocation4], %s106
    %v108 = vld [vmem:[%s107] sm:$0x1]
    %109 = vst [vmem:[#allocation9 + $0xc] sm:$0x1] %v108
    %s110 = sadd.s32 %s45, 13
    %s111 = sld [smem:[#allocation3 + %s110]]
    %s112 = scalar_lea.vmem [#allocation4], %s111
    %v113 = vld [vmem:[%s112] sm:$0x1]
    %114 = vst [vmem:[#allocation9 + $0xd] sm:$0x1] %v113
    %s115 = sadd.s32 %s45, 14
    %s116 = sld [smem:[#allocation3 + %s115]]
    %s117 = scalar_lea.vmem [#allocation4], %s116
    %v118 = vld [vmem:[%s117] sm:$0x1]
    %119 = vst [vmem:[#allocation9 + $0xe] sm:$0x1] %v118
    %s120 = sadd.s32 %s45, 15
    %s121 = sld [smem:[#allocation3 + %s120]]
    %s122 = scalar_lea.vmem [#allocation4], %s121
    %v123 = vld [vmem:[%s122] sm:$0x1]
    %124 = vst [vmem:[#allocation9 + $0xf] sm:$0x1] %v123
    %v125 = vld [vmem:[#allocation9] sm:$0xff]
    %v126 = vld [vmem:[#allocation9 + $0x8] sm:$0xff]
    %v127 = vld [vmem:[#allocation7] sm:$0xff]
    %v128 = vld [vmem:[#allocation7 + $0x8] sm:$0xff]
    %v129 = vadd.f32 %v125, %v127
    %v130 = vadd.f32 %v126, %v128
    %131 = vst [vmem:[#allocation9] sm:$0xff] %v129
    %132 = vst [vmem:[#allocation9 + $0x8] sm:$0xff] %v130
    // Predicated region
    $region18: #{tpu_custom_call.1} parent=1 // pred_check
      _
    $region19: #{tpu_custom_call.1} parent=1 // pred_check_branch
      %134 = sbr.rel (0) target = $region21
    $region20: #{tpu_custom_call.1} parent=1 // pred_region
      %s136 = ssub.s32 256, 256
      %137 = vsyncadd [#allocation6], %s136
      %s138 = sshll.u32 [#allocation9], 4
      %s139 = int_to_ptr.vmem [resolvable:$true] %s138
      %144 = dma.vmem_to_hbm [thread:$0]  %s139, 256, %s3, [#allocation6], 128, 128, 8
    $region21: #{tpu_custom_call.1} parent=1 // pred_fallthru
      _
    // Predicated region
    $region22: #{tpu_custom_call.1} parent=1 // pred_check
      _
    $region23: #{tpu_custom_call.1} parent=1 // pred_check_branch
      %146 = sbr.rel (0) target = $region25
    $region24: #{tpu_custom_call.1} parent=1 // pred_region
      %147 = dma.done [#allocation6], 256
    $region25: #{tpu_custom_call.1} parent=1 // pred_fallthru
      _
    %148 = vsyncpa [#allocation5], 1
    %149 = vsyncpa [#allocation8], 1
    %150 = vsyncpa [#allocation6], 1

</llo_original>
